<compile_context>
chip_gen: v6e
topology: v6e:2x2x1
jax: 0.10.0
libtpu: 0.0.40
codegen_flags: <defaults>
</compile_context>

<pallas_src>
import jax
import jax.numpy as jnp
from jax.experimental import pallas as pl
from jax.experimental.pallas import tpu as pltpu


# ----------------------------------------------------------------------------
# helpers
# ----------------------------------------------------------------------------
def _pick_tile(dim, target, granule=1):
    """Largest multiple-of-`granule` divisor of `dim` that is <= target.

    Falls back to `dim` (full block) if none exists, which is always legal.
    """
    if dim <= target:
        return dim
    start = (target // granule) * granule
    for cand in range(start, 0, -granule):
        if dim % cand == 0:
            return cand
    return dim


def _vmem_limit(nbytes):
    """Scoped VMEM limit with headroom, capped for v7x's 64 MiB VMEM."""
    return int(min(max(nbytes + (2 << 20), 4 << 20), 64 << 20))


# ----------------------------------------------------------------------------
# Tiled matmul + bias kernel (used for the hoisted x-projection and decoder).
#   out = x @ w + b, f32 accumulation in VMEM scratch, bf16 operands.
# ----------------------------------------------------------------------------
def _matmul_bias_kernel(x_ref, w_ref, b_ref, o_ref, acc_ref):
    @pl.when(pl.program_id(2) == 0)
    def _():
        acc_ref[...] = jnp.zeros_like(acc_ref)

    acc_ref[...] += jnp.dot(x_ref[...], w_ref[...],
                            preferred_element_type=jnp.float32)

    @pl.when(pl.program_id(2) == pl.num_programs(2) - 1)
    def _():
        o_ref[...] = (acc_ref[...] + b_ref[...]).astype(o_ref.dtype)


def matmul_bias(x, w, b, *, tm=256, tn=512, tk=512):
    """x: (M, K) bf16; w: (K, N) bf16; b: (1, N) f32 -> (M, N) f32."""
    M, K = x.shape
    K2, N = w.shape
    assert K == K2
    tm = _pick_tile(M, tm, 8)      # second-to-last dims: multiple of 8 (or full)
    tn = _pick_tile(N, tn, 128)    # last dims: multiple of 128 (or full)
    tk = _pick_tile(K, tk, 128)

    grid = (M // tm, N // tn, K // tk)

    block_bytes = 2 * ((tm * tk + tk * tn) * 2          # bf16 x / w blocks
                       + tn * 4 + tm * tn * 4)          # bias + out blocks (f32)
    scratch_bytes = tm * tn * 4

    grid_spec = pltpu.PrefetchScalarGridSpec(
        num_scalar_prefetch=0,
        grid=grid,
        in_specs=[
            pl.BlockSpec((tm, tk), lambda i, j, k: (i, k)),
            pl.BlockSpec((tk, tn), lambda i, j, k: (k, j)),
            pl.BlockSpec((1, tn), lambda i, j, k: (0, j)),
        ],
        out_specs=pl.BlockSpec((tm, tn), lambda i, j, k: (i, j)),
        scratch_shapes=[pltpu.VMEM((tm, tn), jnp.float32)],
    )

    return pl.pallas_call(
        _matmul_bias_kernel,
        out_shape=jax.ShapeDtypeStruct((M, N), jnp.float32),
        grid_spec=grid_spec,
        compiler_params=pltpu.CompilerParams(
            dimension_semantics=("parallel", "parallel", "arbitrary"),
            vmem_limit_bytes=_vmem_limit(block_bytes + scratch_bytes)),
    )(x, w, b)


# ----------------------------------------------------------------------------
# LSTM recurrence kernel.  The input projection xg = x @ W_ih^T + b is
# precomputed for all timesteps; the kernel only does the recurrent
# (B, H) @ (H, 4H) matmul + gate math.  The time axis is blocked: each grid
# step processes TT timesteps with an unrolled in-kernel loop.  h/c state
# persists in VMEM scratch across grid steps; W_hh is DMA'd to VMEM once.
# ----------------------------------------------------------------------------
def _lstm_rec_kernel(xg_ref, h0_ref, c0_ref, whh_hbm_ref,
                     y_ref, hN_ref, cN_ref,
                     h_sc, c_sc, whh_sc, dma_sem):
    tb = pl.program_id(0)
    TT = xg_ref.shape[0]
    H = h_sc.shape[-1]

    @pl.when(tb == 0)
    def _():
        # Single-buffered invariant weight: copy W_hh^T HBM -> VMEM once.
        cp = pltpu.make_async_copy(whh_hbm_ref, whh_sc, dma_sem)
        cp.start()
        cp.wait()
        h_sc[...] = h0_ref[...]
        c_sc[...] = c0_ref[...]

    w_hh = whh_sc[...]                       # (H, 4H) bf16

    def step(s, carry):
        h, c = carry                         # f32 (B, H)
        gates = xg_ref[s] + jnp.dot(h.astype(w_hh.dtype), w_hh,
                                    preferred_element_type=jnp.float32)
        i_g = jax.nn.sigmoid(gates[:, 0 * H:1 * H])
        f_g = jax.nn.sigmoid(gates[:, 1 * H:2 * H])
        g_g = jnp.tanh(gates[:, 2 * H:3 * H])
        o_g = jax.nn.sigmoid(gates[:, 3 * H:4 * H])
        c_new = f_g * c + i_g * g_g
        h_new = o_g * jnp.tanh(c_new)
        y_ref[s] = h_new.astype(y_ref.dtype)
        return h_new, c_new

    h, c = jax.lax.fori_loop(0, TT, step, (h_sc[...], c_sc[...]), unroll=True)
    h_sc[...] = h
    c_sc[...] = c

    @pl.when(tb == pl.num_programs(0) - 1)
    def _():
        hN_ref[...] = h.astype(hN_ref.dtype)
        cN_ref[...] = c.astype(cN_ref.dtype)


def lstm_recurrent(xg, h0, c0, w_hh_t, *, time_block=32):
    """Run the LSTM recurrence given precomputed input-gate projections.

    xg: (T, B, 4H) f32  (= x @ W_ih^T + b_ih + b_hh, all timesteps)
    h0, c0: (B, H) f32;  w_hh_t: (H, 4H) bf16
    Returns: y (T, B, H) f32, hN (B, H) f32, cN (B, H) f32
    """
    T, B, G = xg.shape
    H = h0.shape[-1]
    assert G == 4 * H
    TT = _pick_tile(T, time_block, 1)
    grid = (T // TT,)

    block_bytes = 2 * (TT * B * G * 4        # xg block
                       + 2 * B * H * 4       # h0, c0
                       + TT * B * H * 4      # y block
                       + 2 * B * H * 4)      # hN, cN
    scratch_bytes = 2 * B * H * 4 + H * G * 2

    out_shapes = (
        jax.ShapeDtypeStruct((T, B, H), jnp.float32),
        jax.ShapeDtypeStruct((B, H), jnp.float32),
        jax.ShapeDtypeStruct((B, H), jnp.float32),
    )

    grid_spec = pltpu.PrefetchScalarGridSpec(
        num_scalar_prefetch=0,
        grid=grid,
        in_specs=[
            pl.BlockSpec((TT, B, G), lambda t: (t, 0, 0)),    # xg block
            pl.BlockSpec((B, H), lambda t: (0, 0)),           # h0
            pl.BlockSpec((B, H), lambda t: (0, 0)),           # c0
            pl.BlockSpec(memory_space=pl.ANY),                # W_hh^T stays in HBM
        ],
        out_specs=[
            pl.BlockSpec((TT, B, H), lambda t: (t, 0, 0)),    # y block
            pl.BlockSpec((B, H), lambda t: (0, 0)),           # h_N
            pl.BlockSpec((B, H), lambda t: (0, 0)),           # c_N
        ],
        scratch_shapes=[
            pltpu.VMEM((B, H), jnp.float32),                  # h state
            pltpu.VMEM((B, H), jnp.float32),                  # c state
            pltpu.VMEM((H, G), jnp.bfloat16),                 # resident W_hh^T
            pltpu.SemaphoreType.DMA(()),
        ],
    )

    return pl.pallas_call(
        _lstm_rec_kernel,
        out_shape=out_shapes,
        grid_spec=grid_spec,
        compiler_params=pltpu.CompilerParams(
            dimension_semantics=("arbitrary",),               # sequential recurrence
            vmem_limit_bytes=_vmem_limit(block_bytes + scratch_bytes)),
    )(xg, h0, c0, w_hh_t)


# ----------------------------------------------------------------------------
# Full RNNModel forward (LSTM variant), eval-mode dropout (identity).
# ----------------------------------------------------------------------------
class RNNModelPallas:
    def __init__(self, ntoken, ninp, nhid, nlayers, key):
        self.ntoken, self.ninp, self.nhid, self.nlayers = ntoken, ninp, nhid, nlayers
        keys = jax.random.split(key, 2 + 4 * nlayers)
        initrange = 0.1
        # encoder / decoder init matches RNNModel.init_weights()
        self.encoder_w = jax.random.uniform(
            keys[0], (ntoken, ninp), jnp.float32, -initrange, initrange)
        decoder_w = jax.random.uniform(
            keys[1], (ntoken, nhid), jnp.float32, -initrange, initrange)
        # Transposes / casts done ONCE here (not per forward call).
        self.decoder_w_t = decoder_w.T.astype(jnp.bfloat16)          # (H, V)
        self.decoder_b = jnp.zeros((1, ntoken), jnp.float32)

        # LSTM params: PyTorch default uniform(-1/sqrt(nhid), 1/sqrt(nhid))
        stdv = 1.0 / (nhid ** 0.5)
        self.layer_params = []
        for l in range(nlayers):
            in_dim = ninp if l == 0 else nhid
            k = keys[2 + 4 * l: 6 + 4 * l]
            w_ih = jax.random.uniform(k[0], (4 * nhid, in_dim), jnp.float32, -stdv, stdv)
            w_hh = jax.random.uniform(k[1], (4 * nhid, nhid), jnp.float32, -stdv, stdv)
            b_ih = jax.random.uniform(k[2], (4 * nhid,), jnp.float32, -stdv, stdv)
            b_hh = jax.random.uniform(k[3], (4 * nhid,), jnp.float32, -stdv, stdv)
            self.layer_params.append((
                w_ih.T.astype(jnp.bfloat16),                         # (I, 4H) bf16
                w_hh.T.astype(jnp.bfloat16),                         # (H, 4H) bf16
                (b_ih + b_hh).reshape(1, 4 * nhid).astype(jnp.float32),
            ))

    def init_hidden(self, bsz):
        z = jnp.zeros((self.nlayers, bsz, self.nhid), jnp.float32)
        return (z, z)

    def forward(self, input_ids, hidden):
        # input_ids: (T, B) int32; hidden: (h0, c0), each (L, B, H)
        h0_all, c0_all = hidden
        T, B = input_ids.shape
        # Embedding gather kept in XLA (data-dependent gather).
        emb = jnp.take(self.encoder_w, input_ids, axis=0)            # (T, B, ninp)
        x = emb                                                      # dropout: identity (eval)
        h_out, c_out = [], []
        for l in range(self.nlayers):
            w_ih_t, w_hh_t, b = self.layer_params[l]
            in_dim = x.shape[-1]
            # Hoisted input projection over all timesteps (one big matmul).
            xg = matmul_bias(x.reshape(T * B, in_dim).astype(jnp.bfloat16),
                             w_ih_t, b).reshape(T, B, 4 * self.nhid)
            y, hN, cN = lstm_recurrent(xg, h0_all[l], c0_all[l], w_hh_t)
            h_out.append(hN)
            c_out.append(cN)
            x = y                                                    # inter-layer dropout: identity (eval)
        output = x                                                   # output dropout: identity (eval)
        decoded = matmul_bias(output.reshape(T * B, self.nhid).astype(jnp.bfloat16),
                              self.decoder_w_t, self.decoder_b)
        decoded = decoded.reshape(T, B, self.ntoken)
        new_hidden = (jnp.stack(h_out, axis=0), jnp.stack(c_out, axis=0))
        return decoded, new_hidden


# ----------------------------------------------------------------------------
# Pure-JAX reference mirroring the kernel numerics (bf16 weights, f32 state),
# used only for the correctness check in __main__.
# ----------------------------------------------------------------------------
def _reference_forward(model, input_ids, hidden):
    h0_all, c0_all = hidden
    T, B = input_ids.shape
    H = model.nhid
    x = jnp.take(model.encoder_w, input_ids, axis=0)
    h_out, c_out = [], []
    for l in range(model.nlayers):
        w_ih_t, w_hh_t, b = model.layer_params[l]
        xg = (jnp.dot(x.reshape(T * B, -1).astype(jnp.bfloat16), w_ih_t,
                      preferred_element_type=jnp.float32) + b).reshape(T, B, 4 * H)
        h, c = h0_all[l], c0_all[l]
        ys = []
        for t in range(T):
            g = xg[t] + jnp.dot(h.astype(jnp.bfloat16), w_hh_t,
                                preferred_element_type=jnp.float32)
            i_g = jax.nn.sigmoid(g[:, 0 * H:1 * H])
            f_g = jax.nn.sigmoid(g[:, 1 * H:2 * H])
            g_g = jnp.tanh(g[:, 2 * H:3 * H])
            o_g = jax.nn.sigmoid(g[:, 3 * H:4 * H])
            c = f_g * c + i_g * g_g
            h = o_g * jnp.tanh(c)
            ys.append(h)
        x = jnp.stack(ys, axis=0)
        h_out.append(h)
        c_out.append(c)
    dec = (jnp.dot(x.reshape(T * B, -1).astype(jnp.bfloat16), model.decoder_w_t,
                   preferred_element_type=jnp.float32) + model.decoder_b)
    return dec.reshape(T, B, model.ntoken), (jnp.stack(h_out), jnp.stack(c_out))


if __name__ == "__main__":
    ntoken, ninp, nhid, nlayers = 32, 32, 32, 2
    T, B = 8, 2

    key = jax.random.PRNGKey(0)
    k_model, k_ids = jax.random.split(key)

    model = RNNModelPallas(ntoken, ninp, nhid, nlayers, k_model)
    input_ids = jax.random.randint(k_ids, (T, B), 0, ntoken, dtype=jnp.int32)
    hidden = model.init_hidden(B)

    decoded, (hN, cN) = model.forward(input_ids, hidden)
    jax.block_until_ready(decoded)
    jax.block_until_ready(hN)
    jax.block_until_ready(cN)

    assert decoded.shape == (T, B, ntoken)
    assert hN.shape == (nlayers, B, nhid)
    assert cN.shape == (nlayers, B, nhid)
    assert bool(jnp.all(jnp.isfinite(decoded)))

    ref_dec, (ref_h, ref_c) = _reference_forward(model, input_ids, hidden)
    assert float(jnp.max(jnp.abs(decoded - ref_dec))) < 5e-3
    assert float(jnp.max(jnp.abs(hN - ref_h))) < 5e-3
    assert float(jnp.max(jnp.abs(cN - ref_c))) < 5e-3

    print("KERNEL_OK")
</pallas_src>

<mosaic_0001>
module attributes {stable_mosaic.version = 11 : i64} {
  func.func @_matmul_bias_kernel(%arg0: i32, %arg1: i32, %arg2: i32, %arg3: memref<16x32xbf16, #tpu.memory_space<vmem>>, %arg4: memref<32x128xbf16, #tpu.memory_space<vmem>>, %arg5: memref<1x128xf32, #tpu.memory_space<vmem>>, %arg6: memref<16x128xf32, #tpu.memory_space<vmem>>, %arg7: memref<16x128xf32, #tpu.memory_space<vmem>>) attributes {dimension_semantics = [#tpu.dimension_semantics<parallel>, #tpu.dimension_semantics<parallel>, #tpu.dimension_semantics<arbitrary>], iteration_bounds = array<i64: 1, 1, 1>, scalar_prefetch = 0 : i64, scratch_operands = 1 : i64, tpu.core_type = #tpu.core_type<tc>, window_params = [{transform_indices = @transform_0, window_bounds = array<i64: 16, 32>}, {transform_indices = @transform_1, window_bounds = array<i64: 32, 128>}, {transform_indices = @transform_2, window_bounds = array<i64: 1, 128>}, {transform_indices = @transform_3, window_bounds = array<i64: 16, 128>}]} {
    %c0_i32 = arith.constant 0 : i32
    %0 = arith.cmpi eq, %arg2, %c0_i32 : i32
    %1 = arith.extui %0 : i1 to i32
    %c0_i32_0 = arith.constant 0 : i32
    %2 = arith.cmpi ne, %1, %c0_i32_0 : i32
    scf.if %2 {
      %cst_10 = arith.constant 0.000000e+00 : f32
      %12 = vector.broadcast %cst_10 : f32 to vector<16x128xf32>
      %c0_11 = arith.constant 0 : index
      %c0_12 = arith.constant 0 : index
      %13 = vector.load %arg7[%c0_11, %c0_12] : memref<16x128xf32, #tpu.memory_space<vmem>>, vector<16x128xf32>
      tpu.vector_store %arg7[%c0_11, %c0_12], %12 {strides = array<i32>} : memref<16x128xf32, #tpu.memory_space<vmem>>, vector<16x128xf32>,
    } else {
    }
    %c0 = arith.constant 0 : index
    %c0_1 = arith.constant 0 : index
    %3 = vector.load %arg7[%c0, %c0_1] : memref<16x128xf32, #tpu.memory_space<vmem>>, vector<16x128xf32>
    %c0_2 = arith.constant 0 : index
    %c0_3 = arith.constant 0 : index
    %4 = vector.load %arg3[%c0_2, %c0_3] : memref<16x32xbf16, #tpu.memory_space<vmem>>, vector<16x32xbf16>
    %c0_4 = arith.constant 0 : index
    %c0_5 = arith.constant 0 : index
    %5 = vector.load %arg4[%c0_4, %c0_5] : memref<32x128xbf16, #tpu.memory_space<vmem>>, vector<32x128xbf16>
    %cst = arith.constant dense<0.000000e+00> : vector<16x128xf32>
    %6 = tpu.matmul %4, %5, %cst {dimension_numbers = #tpu.dot_dimension_numbers<[1], [0], [0], [1], [0, 0, 1, 1], [], []>} : vector<16x32xbf16>, vector<32x128xbf16>, vector<16x128xf32> -> vector<16x128xf32>
    %7 = arith.addf %3, %6 : vector<16x128xf32>
    %c0_6 = arith.constant 0 : index
    %c0_7 = arith.constant 0 : index
    %8 = vector.load %arg7[%c0_6, %c0_7] : memref<16x128xf32, #tpu.memory_space<vmem>>, vector<16x128xf32>
    tpu.vector_store %arg7[%c0_6, %c0_7], %7 {strides = array<i32>} : memref<16x128xf32, #tpu.memory_space<vmem>>, vector<16x128xf32>,
    %c0_i32_8 = arith.constant 0 : i32
    %9 = arith.cmpi eq, %arg2, %c0_i32_8 : i32
    %10 = arith.extui %9 : i1 to i32
    %c0_i32_9 = arith.constant 0 : i32
    %11 = arith.cmpi ne, %10, %c0_i32_9 : i32
    scf.if %11 {
      %c0_10 = arith.constant 0 : index
      %c0_11 = arith.constant 0 : index
      %12 = vector.load %arg7[%c0_10, %c0_11] : memref<16x128xf32, #tpu.memory_space<vmem>>, vector<16x128xf32>
      %c0_12 = arith.constant 0 : index
      %c0_13 = arith.constant 0 : index
      %13 = vector.load %arg5[%c0_12, %c0_13] : memref<1x128xf32, #tpu.memory_space<vmem>>, vector<1x128xf32>
      %14 = vector.broadcast %13 : vector<1x128xf32> to vector<16x128xf32>
      %15 = arith.addf %12, %14 : vector<16x128xf32>
      %c0_14 = arith.constant 0 : index
      %c0_15 = arith.constant 0 : index
      %16 = vector.load %arg6[%c0_14, %c0_15] : memref<16x128xf32, #tpu.memory_space<vmem>>, vector<16x128xf32>
      tpu.vector_store %arg6[%c0_14, %c0_15], %15 {strides = array<i32>} : memref<16x128xf32, #tpu.memory_space<vmem>>, vector<16x128xf32>,
    } else {
    }
    return
  }
  func.func @transform_0(%arg0: i32, %arg1: i32, %arg2: i32) -> (i32, i32) {
    %c0_i32 = arith.constant 0 : i32
    return %arg0, %arg2 : i32, i32
  }
  func.func @transform_1(%arg0: i32, %arg1: i32, %arg2: i32) -> (i32, i32) {
    %c0_i32 = arith.constant 0 : i32
    return %arg2, %arg1 : i32, i32
  }
  func.func @transform_2(%arg0: i32, %arg1: i32, %arg2: i32) -> (i32, i32) {
    %c0_i32 = arith.constant 0 : i32
    %c0_i32_0 = arith.constant 0 : i32
    return %c0_i32, %arg1 : i32, i32
  }
  func.func @transform_3(%arg0: i32, %arg1: i32, %arg2: i32) -> (i32, i32) {
    %c0_i32 = arith.constant 0 : i32
    return %arg0, %arg1 : i32, i32
  }
}

</mosaic_0001>

<llo_original>
// kernel: tpu_custom_call.1
$region0: #{tpu_custom_call.1}
  #allocation0 [shape = 'u32[]', space=smem, size = 0x4, offset = 0x4, fixed_abs, tag = 'smem constant byte address 0x4 - core index']
  #allocation1 [shape = 'u32[144,128]{1,0:T(1,128)}', space=vmem, size = 0x12000, scoped, tag = 'internal scratch']
  #allocation2 [shape = 'f32[16,128]{1,0:T(8,128)}', space=vmem, size = 0x2000, scoped, tag = 'scratch operand']
  %s0 = inlined_call_operand.hbm [shape: bf16[16,32], index: 0, kind: input, shape index: {}]
  %s1 = inlined_call_operand.hbm [shape: bf16[32,128], index: 1, kind: input, shape index: {}]
  %s2 = inlined_call_operand.vmem [shape: f32[1,128], index: 2, kind: input, shape index: {}]
  %s3 = inlined_call_operand.hbm [shape: f32[16,128], index: 3, kind: output, shape index: {}]
  %s4 = sld [smem:[#allocation0]]
  $region38: #{tpu_custom_call.1} parent=0
    _
  %s6 = ssub.s32 1, %s4
  %s7 = scalar_select 0, %s6, %s4
  $region1: #{tpu_custom_call.1} parent=0
    #allocation3 [shape = 'u8[4096]{0}', space=vmem, size = 0x1000, scoped, tag = 'input window, operand 0, single buffered']
    #allocation4 [shape = 's32[1]{0}', space=sflag, size = 0x4, scoped, tag = 'scoped memory for tpu_custom_call.1']
    #allocation5 [shape = 's32[1]{0}', space=sflag, size = 0x4, scoped, tag = 'scoped memory for tpu_custom_call.1']
    #allocation6 [shape = 'u8[8192]{0}', space=vmem, size = 0x2000, scoped, tag = 'input window, operand 1, single buffered']
    #allocation7 [shape = 's32[1]{0}', space=sflag, size = 0x4, scoped, tag = 'scoped memory for tpu_custom_call.1']
    #allocation8 [shape = 'u8[8192]{0}', space=vmem, size = 0x2000, scoped, tag = 'output window, operand 0, single buffered']
    %8 = vsyncpa [#allocation4], 0
    %9 = vsyncpa [#allocation7], 0
    %10 = vsyncpa [#allocation5], 0
    // Predicated region
    $region2: #{tpu_custom_call.1} parent=1 // pred_check
      _
    $region3: #{tpu_custom_call.1} parent=1 // pred_check_branch
      %12 = sbr.rel (0) target = $region5
    $region4: #{tpu_custom_call.1} parent=1 // pred_region
      %s14 = ssub.s32 128, 128
      %15 = vsyncadd [#allocation4], %s14
      %s16 = sshll.u32 [#allocation3], 4
      %s17 = int_to_ptr.vmem [resolvable:$true] %s16
      %22 = dma.hbm_to_vmem [thread:$0]  %s0, 128, %s17, [#allocation4], 64, 64, 4
    $region5: #{tpu_custom_call.1} parent=1 // pred_fallthru
      _
    // Predicated region
    $region6: #{tpu_custom_call.1} parent=1 // pred_check
      _
    $region7: #{tpu_custom_call.1} parent=1 // pred_check_branch
      %24 = sbr.rel (0) target = $region9
    $region8: #{tpu_custom_call.1} parent=1 // pred_region
      %s26 = ssub.s32 256, 256
      %27 = vsyncadd [#allocation7], %s26
      %s28 = sshll.u32 [#allocation6], 4
      %s29 = int_to_ptr.vmem [resolvable:$true] %s28
      %34 = dma.hbm_to_vmem [thread:$0]  %s1, 256, %s29, [#allocation7], 64, 64, 4
    $region9: #{tpu_custom_call.1} parent=1 // pred_fallthru
      _
    // Predicated region
    $region10: #{tpu_custom_call.1} parent=1 // pred_check
      _
    $region11: #{tpu_custom_call.1} parent=1 // pred_check_branch
      %36 = sbr.rel (0) target = $region13
    $region12: #{tpu_custom_call.1} parent=1 // pred_region
      _
    $region13: #{tpu_custom_call.1} parent=1 // pred_fallthru
      _
    // Predicated region
    $region14: #{tpu_custom_call.1} parent=1 // pred_check
      _
    $region15: #{tpu_custom_call.1} parent=1 // pred_check_branch
      %38 = sbr.rel (0) target = $region17
    $region16: #{tpu_custom_call.1} parent=1 // pred_region
      %39 = dma.done [#allocation4], 128
    $region17: #{tpu_custom_call.1} parent=1 // pred_fallthru
      _
    // Predicated region
    $region18: #{tpu_custom_call.1} parent=1 // pred_check
      _
    $region19: #{tpu_custom_call.1} parent=1 // pred_check_branch
      %41 = sbr.rel (0) target = $region21
    $region20: #{tpu_custom_call.1} parent=1 // pred_region
      %42 = dma.done [#allocation7], 256
    $region21: #{tpu_custom_call.1} parent=1 // pred_fallthru
      _
    %p44 = scmp.eq.s32.totalorder 0, 0
    // Predicated region
    $region22: #{tpu_custom_call.1} parent=1 // pred_check
      %p45 = pneg %p44
    $region23: #{tpu_custom_call.1} parent=1 // pred_check_branch
      %47 = sbr.rel (%p45) target = $region25
    $region24: #{tpu_custom_call.1} parent=1 // pred_region
      %48 = vst [vmem:[#allocation2] sm:$0xff] 0.0
      %49 = vst [vmem:[#allocation2 + $0x8] sm:$0xff] 0.0
    $region25: #{tpu_custom_call.1} parent=1 // pred_fallthru
      _
    %v50 = vld [vmem:[#allocation2] sm:$0xff]
    %v51 = vld [vmem:[#allocation2 + $0x8] sm:$0xff]
    %v52 = vld [vmem:[#allocation3] sm:$0xf]
    %v53 = vld [vmem:[#allocation3 + $0x4] sm:$0xf]
    %v54 = vld [vmem:[#allocation6] sm:$0xf]
    %v55 = vld [vmem:[#allocation6 + $0x4] sm:$0xf]
    %v56 = vld [vmem:[#allocation6 + $0x8] sm:$0xf]
    %v57 = vld [vmem:[#allocation6 + $0xc] sm:$0xf]
    %v60 = vunpack.c.l.b16 %v52
    %v61 = vunpack.c.l.b16 %v53
    %v62 = vpack.c.b16 %v61, %v60
    %v67 = vunpack.c.l.b16 %v54
    %v68 = vunpack.c.l.b16 %v55
    %v69 = vunpack.c.l.b16 %v56
    %v70 = vunpack.c.l.b16 %v57
    %v71 = vpack.c.b16 %v68, %v67
    %v72 = vpack.c.b16 %v70, %v69
    %vm75 = vcmask 261120
    %v77 = vsel %vm75, %v62, 0
    %79 = vmatprep.subr.bf16.mxu0 0
    %80 = vmatpush1.bf16.msra.mxu0 0
    %81 = vmatprep.subr.bf16.mxu0 0
    %82 = vmatpush1.bf16.msra.mxu0 0
    %83 = vmatprep.subr.bf16.mxu0 0
    %84 = vmatpush1.bf16.msra.mxu0 0
    %85 = vmatprep.subr.bf16.mxu0 0
    %86 = vmatpush1.bf16.msra.mxu0 0
    %87 = vmatprep.subr.bf16.mxu0 0
    %88 = vmatpush1.bf16.msra.mxu0 0
    %89 = vmatprep.subr.bf16.mxu0 0
    %90 = vmatpush1.bf16.msra.mxu0 0
    %91 = vmatprep.subr.bf16.mxu0 0
    %92 = vmatpush1.bf16.msra.mxu0 %v72
    %93 = vmatprep.subr.bf16.mxu0 0
    %94 = vmatpush1.bf16.msra.mxu0 %v71
    %95 = vmatprep.subr.bf16.mxu0 0
    %96 = vmatpush2.bf16.msra.mxu0 0
    %97 = vmatprep.subr.bf16.mxu0 0
    %98 = vmatpush2.bf16.msra.mxu0 0
    %99 = vmatprep.subr.bf16.mxu0 0
    %100 = vmatpush2.bf16.msra.mxu0 0
    %101 = vmatprep.subr.bf16.mxu0 0
    %102 = vmatpush2.bf16.msra.mxu0 0
    %103 = vmatprep.subr.bf16.mxu0 0
    %104 = vmatpush2.bf16.msra.mxu0 0
    %105 = vmatprep.subr.bf16.mxu0 0
    %106 = vmatpush2.bf16.msra.mxu0 0
    %107 = vmatprep.subr.bf16.mxu0 0
    %108 = vmatpush2.bf16.msra.mxu0 0
    %109 = vmatprep.subr.bf16.mxu0 0
    %110 = vmatpush2.bf16.msra.mxu0 0
    %111 = vmatprep.mubr.bf16.mxu0 0
    %112 = vmatmul.mubr.bf16.gmra.mxu0 %v77
    %v113 = vpop.f32.mrf.mxu0
    %v114 = vadd.f32 0.0, %v113
    %v115 = vpop.f32.mrf.mxu0
    %v116 = vpop.f32.mrf.mxu0
    %v117 = vadd.f32 0.0, %v116
    %v118 = vpop.f32.mrf.mxu0
    %119 = vdwg.mxu0
    %v120 = vadd.f32 %v50, %v114
    %v121 = vadd.f32 %v51, %v117
    %122 = vst [vmem:[#allocation2] sm:$0xff] %v120
    %123 = vst [vmem:[#allocation2 + $0x8] sm:$0xff] %v121
    // Predicated region
    $region26: #{tpu_custom_call.1} parent=1 // pred_check
      %p124 = pneg %p44
    $region27: #{tpu_custom_call.1} parent=1 // pred_check_branch
      %126 = sbr.rel (%p124) target = $region29
    $region28: #{tpu_custom_call.1} parent=1 // pred_region
      %v127 = vld [vmem:[#allocation2] sm:$0xff]
      %v128 = vld [vmem:[#allocation2 + $0x8] sm:$0xff]
      %v129 = vld [vmem:[%s2] sm:$0x1]
      %v131 = vlaneseq
      %v132 = vshrl.u32 %v131, 7
      %v133 = vsub.s32 0, %v132
      %v134 = vrot.slane %v129, %v133
      %v136 = vadd.f32 %v127, %v134
      %v137 = vadd.f32 %v128, %v134
      %138 = vst [vmem:[#allocation8] sm:$0xff] %v136
      %139 = vst [vmem:[#allocation8 + $0x8] sm:$0xff] %v137
    $region29: #{tpu_custom_call.1} parent=1 // pred_fallthru
      _
    // Predicated region
    $region30: #{tpu_custom_call.1} parent=1 // pred_check
      _
    $region31: #{tpu_custom_call.1} parent=1 // pred_check_branch
      %141 = sbr.rel (0) target = $region33
    $region32: #{tpu_custom_call.1} parent=1 // pred_region
      %s143 = ssub.s32 256, 256
      %144 = vsyncadd [#allocation5], %s143
      %s145 = sshll.u32 [#allocation8], 4
      %s146 = int_to_ptr.vmem [resolvable:$true] %s145
      %151 = dma.vmem_to_hbm [thread:$0]  %s146, 256, %s3, [#allocation5], 128, 128, 8
    $region33: #{tpu_custom_call.1} parent=1 // pred_fallthru
      _
    // Predicated region
    $region34: #{tpu_custom_call.1} parent=1 // pred_check
      _
    $region35: #{tpu_custom_call.1} parent=1 // pred_check_branch
      %153 = sbr.rel (0) target = $region37
    $region36: #{tpu_custom_call.1} parent=1 // pred_region
      %154 = dma.done [#allocation5], 256
    $region37: #{tpu_custom_call.1} parent=1 // pred_fallthru
      _
    %155 = vsyncpa [#allocation4], 1
    %156 = vsyncpa [#allocation7], 1
    %157 = vsyncpa [#allocation5], 1

</llo_original>
